<compile_context>
chip_gen: v7x
topology: tpu7x:2x2x1
jax: 0.10.0
libtpu: 0.0.40
codegen_flags: <defaults>
</compile_context>

<pallas_src>
import jax
import jax.numpy as jnp
from jax.experimental import pallas as pl
from jax.experimental.pallas import tpu as pltpu


def _linear_kernel(x_ref, wt_ref, b_ref, o_ref):
    # x_ref:  (tile_m, K)      VMEM
    # wt_ref: (K, tile_n)      VMEM  (W transposed / block-diagonal)
    # b_ref:  (1, tile_n)      VMEM  (f32 bias)
    # o_ref:  (tile_m, tile_n) VMEM
    acc = jnp.dot(x_ref[...], wt_ref[...], preferred_element_type=jnp.float32)
    o_ref[...] = (acc + b_ref[...]).astype(o_ref.dtype)


def _round_up(a, b):
    return ((a + b - 1) // b) * b


def _tpu_config():
    """Per-generation tiling knobs (num TensorCores, fold target, VMEM budgets)."""
    kind = ""
    try:
        kind = (jax.devices()[0].device_kind or "").lower()
    except Exception:
        pass
    if "v7" in kind:       # 2 TC/chip, 64 MiB VMEM, 3.2 TB/s HBM
        return dict(num_tc=2, lane_target=256, vmem_limit=32 * 2**20,
                    stream_budget=16 * 2**20, weight_budget=4 * 2**20,
                    tile_m_default=8192)
    if "v6" in kind:       # 1 TC/chip, 128 MiB VMEM
        return dict(num_tc=1, lane_target=256, vmem_limit=64 * 2**20,
                    stream_budget=24 * 2**20, weight_budget=8 * 2**20,
                    tile_m_default=4096)
    if "v5" in kind or "v4" in kind:   # 1 TC/chip, 128 MiB VMEM, 128x128 MXU
        return dict(num_tc=1, lane_target=128, vmem_limit=48 * 2**20,
                    stream_budget=16 * 2**20, weight_budget=8 * 2**20,
                    tile_m_default=4096)
    # Unknown / interpreter: conservative defaults.
    return dict(num_tc=1, lane_target=128, vmem_limit=32 * 2**20,
                stream_budget=8 * 2**20, weight_budget=4 * 2**20,
                tile_m_default=2048)


def pre_interpolation(x, weight, bias, *, tile_m=None, compute_dtype=None):
    """y = x @ weight.T + bias, matching torch.nn.Linear.

    x:      (..., dim_in)
    weight: (dim_out, dim_in)   (PyTorch convention)
    bias:   (dim_out,)
    compute_dtype: optional narrower matmul dtype (e.g. jnp.bfloat16);
        accumulation stays f32, output keeps x.dtype.  Default (None) keeps
        the exact f32 semantics of the PyTorch module.
    """
    dim_out, dim_in = weight.shape
    orig_shape = x.shape
    assert orig_shape[-1] == dim_in
    out_dtype = x.dtype

    cfg = _tpu_config()

    x2d = x.reshape(-1, dim_in)          # row-major flatten (no data movement)
    M = x2d.shape[0]

    wt = weight.T                        # (dim_in, dim_out)
    b2d = bias.reshape(1, dim_out).astype(jnp.float32)

    # --- Lane-dense repack (dim < 128) ------------------------------------
    # Fold f = lane_target // dim consecutive rows into the lane axis (a free
    # bitcast reshape) and use a block-diagonal weight (f copies of W^T) so
    # stores are unmasked full-lane vst and the MXU runs with K = N = 128/256.
    # If M is not a multiple of f, pad a handful of zero rows instead of
    # silently falling back to masked <128-lane stores.
    fold = 1
    lane_target = cfg["lane_target"]
    if dim_in == dim_out and dim_in < 128 and lane_target % dim_in == 0:
        fold = lane_target // dim_in
    m_pad = 0
    if fold > 1:
        m_pad = _round_up(max(M, 1), fold) - M
        if m_pad:
            x2d = jnp.pad(x2d, ((0, m_pad), (0, 0)))
        x2d = x2d.reshape((M + m_pad) // fold, fold * dim_in)
        wt = jnp.kron(jnp.eye(fold, dtype=wt.dtype), wt)   # block-diagonal W^T
        b2d = jnp.tile(b2d, (1, fold))

    if compute_dtype is not None:
        x2d = x2d.astype(compute_dtype)
        wt = wt.astype(compute_dtype)

    M_rows, K = x2d.shape
    N = wt.shape[1]
    in_itemsize = jnp.dtype(x2d.dtype).itemsize
    w_itemsize = jnp.dtype(wt.dtype).itemsize
    out_itemsize = jnp.dtype(out_dtype).itemsize
    sublane = {4: 8, 2: 16, 1: 32}.get(min(in_itemsize, out_itemsize), 8)

    def _finish(y2d):
        if fold > 1:
            y2d = y2d.reshape(M + m_pad, dim_out)
            if m_pad:
                y2d = y2d[:M]
        return y2d.reshape(*orig_shape[:-1], dim_out)

    # --- N (dim_out) tiling -------------------------------------------------
    # Keep the whole weight resident when it fits the per-buffer budget;
    # otherwise stream (K, tile_n) column-tiles of W^T over a second grid axis.
    if K * N * w_itemsize <= cfg["weight_budget"]:
        tile_n = N
    else:
        tile_n = max(128, (cfg["weight_budget"] // (K * w_itemsize)) // 128 * 128)
        tile_n = min(tile_n, _round_up(N, 128))

    # Bail out only if even the minimal blocks cannot fit VMEM (huge K).
    min_fit = 2 * (sublane * K * in_itemsize
                   + K * min(tile_n, 128) * w_itemsize
                   + sublane * min(tile_n, 128) * out_itemsize)
    if min_fit > cfg["vmem_limit"]:
        # TODO(synk): add a K grid axis with an f32 VMEM accumulator for
        # extremely large dim_in instead of falling back to XLA.
        y = (jnp.dot(x2d, wt, preferred_element_type=jnp.float32)
             + b2d).astype(out_dtype)
        return _finish(y)

    # --- Row (M) tiling -----------------------------------------------------
    # Large tiles amortize the ~0.35 us per-grid-step overhead; clamp so the
    # double-buffered streaming footprint (x tile + out tile) stays within the
    # generation's budget.
    bytes_per_row = K * in_itemsize + tile_n * out_itemsize
    tm = tile_m if tile_m is not None else cfg["tile_m_default"]
    tm = min(tm,
             max(sublane, cfg["stream_budget"] // (2 * bytes_per_row)),
             _round_up(M_rows, sublane))
    # Split rows across TensorCores only on multi-TC chips (v7x) and only when
    # each core still gets substantial work (>= 1024 rows); on 1-TC v5e/v6e or
    # for tiny M the extra grid step is pure overhead.
    if cfg["num_tc"] > 1 and M_rows >= cfg["num_tc"] * 1024:
        tm = min(tm, _round_up(pl.cdiv(M_rows, cfg["num_tc"]), sublane))
    tm = max(sublane, (tm // sublane) * sublane)

    grid = (pl.cdiv(M_rows, tm), pl.cdiv(N, tile_n))   # ragged blocks masked

    out = pl.pallas_call(
        _linear_kernel,
        out_shape=jax.ShapeDtypeStruct((M_rows, N), out_dtype),
        grid_spec=pl.GridSpec(
            grid=grid,
            in_specs=[
                pl.BlockSpec((tm, K), lambda i, j: (i, 0)),
                pl.BlockSpec((K, tile_n), lambda i, j: (0, j)),
                pl.BlockSpec((1, tile_n), lambda i, j: (0, j)),
            ],
            out_specs=pl.BlockSpec((tm, tile_n), lambda i, j: (i, j)),
        ),
        compiler_params=pltpu.CompilerParams(
            dimension_semantics=("parallel", "parallel"),
            vmem_limit_bytes=cfg["vmem_limit"],
        ),
    )(x2d, wt, b2d)

    return _finish(out)


if __name__ == "__main__":
    key = jax.random.PRNGKey(0)

    def make_linear_params(k, dim):
        kw, kb = jax.random.split(k)
        bound = 1.0 / (dim ** 0.5)
        w = jax.random.uniform(kw, (dim, dim), jnp.float32, -bound, bound)
        b = jax.random.uniform(kb, (dim,), jnp.float32, -bound, bound)
        return w, b

    k1, k2, k3, k4, k5, k6 = jax.random.split(key, 6)

    # Case 1: module default dim=256 (already lane-dense, single grid step).
    dim = 256
    x = jax.random.normal(k1, (2, 64, dim), dtype=jnp.float32)
    w, b = make_linear_params(k2, dim)
    y = jax.block_until_ready(pre_interpolation(x, w, b))
    y_ref = x @ w.T + b
    assert y.shape == (2, 64, dim)
    assert jnp.allclose(y, y_ref, atol=1e-4, rtol=1e-4), \
        float(jnp.max(jnp.abs(y - y_ref)))

    # Case 2: dim=32 (exercises the lane-dense fold, M divisible by fold).
    dim = 32
    x = jax.random.normal(k3, (2, 1024, dim), dtype=jnp.float32)
    w, b = make_linear_params(k4, dim)
    y = jax.block_until_ready(pre_interpolation(x, w, b))
    y_ref = x @ w.T + b
    assert y.shape == (2, 1024, dim)
    assert jnp.allclose(y, y_ref, atol=1e-4, rtol=1e-4), \
        float(jnp.max(jnp.abs(y - y_ref)))

    # Case 3: dim=32 with M not divisible by the fold (exercises the pad path).
    dim = 32
    x = jax.random.normal(k5, (1, 999, dim), dtype=jnp.float32)
    w, b = make_linear_params(k6, dim)
    y = jax.block_until_ready(pre_interpolation(x, w, b))
    y_ref = x @ w.T + b
    assert y.shape == (1, 999, dim)
    assert jnp.allclose(y, y_ref, atol=1e-4, rtol=1e-4), \
        float(jnp.max(jnp.abs(y - y_ref)))

    print("KERNEL_OK")
</pallas_src>

<mosaic_0001>
module attributes {stable_mosaic.version = 11 : i64} {
  func.func @_linear_kernel(%arg0: i32, %arg1: i32, %arg2: memref<128x256xf32, #tpu.memory_space<vmem>>, %arg3: memref<256x256xf32, #tpu.memory_space<vmem>>, %arg4: memref<1x256xf32, #tpu.memory_space<vmem>>, %arg5: memref<128x256xf32, #tpu.memory_space<vmem>>) attributes {dimension_semantics = [#tpu.dimension_semantics<parallel>, #tpu.dimension_semantics<parallel>], iteration_bounds = array<i64: 1, 1>, scalar_prefetch = 0 : i64, scratch_operands = 0 : i64, tpu.core_type = #tpu.core_type<tc>, window_params = [{transform_indices = @transform_0, window_bounds = array<i64: 128, 256>}, {transform_indices = @transform_1, window_bounds = array<i64: 256, 256>}, {transform_indices = @transform_2, window_bounds = array<i64: 1, 256>}, {transform_indices = @transform_3, window_bounds = array<i64: 128, 256>}]} {
    %c0 = arith.constant 0 : index
    %c0_0 = arith.constant 0 : index
    %0 = vector.load %arg2[%c0, %c0_0] : memref<128x256xf32, #tpu.memory_space<vmem>>, vector<128x256xf32>
    %c0_1 = arith.constant 0 : index
    %c0_2 = arith.constant 0 : index
    %1 = vector.load %arg3[%c0_1, %c0_2] : memref<256x256xf32, #tpu.memory_space<vmem>>, vector<256x256xf32>
    %cst = arith.constant dense<0.000000e+00> : vector<128x256xf32>
    %2 = tpu.matmul %0, %1, %cst {dimension_numbers = #tpu.dot_dimension_numbers<[1], [0], [0], [1], [0, 0, 1, 1], [], []>} : vector<128x256xf32>, vector<256x256xf32>, vector<128x256xf32> -> vector<128x256xf32>
    %c0_3 = arith.constant 0 : index
    %c0_4 = arith.constant 0 : index
    %3 = vector.load %arg4[%c0_3, %c0_4] : memref<1x256xf32, #tpu.memory_space<vmem>>, vector<1x256xf32>
    %4 = vector.broadcast %3 : vector<1x256xf32> to vector<128x256xf32>
    %5 = arith.addf %2, %4 : vector<128x256xf32>
    %c0_5 = arith.constant 0 : index
    %c0_6 = arith.constant 0 : index
    %6 = vector.load %arg5[%c0_5, %c0_6] : memref<128x256xf32, #tpu.memory_space<vmem>>, vector<128x256xf32>
    tpu.vector_store %arg5[%c0_5, %c0_6], %5 {strides = array<i32>} : memref<128x256xf32, #tpu.memory_space<vmem>>, vector<128x256xf32>,
    return
  }
  func.func @transform_0(%arg0: i32, %arg1: i32) -> (i32, i32) {
    %c0_i32 = arith.constant 0 : i32
    %c0_i32_0 = arith.constant 0 : i32
    return %arg0, %c0_i32 : i32, i32
  }
  func.func @transform_1(%arg0: i32, %arg1: i32) -> (i32, i32) {
    %c0_i32 = arith.constant 0 : i32
    %c0_i32_0 = arith.constant 0 : i32
    return %c0_i32, %arg1 : i32, i32
  }
  func.func @transform_2(%arg0: i32, %arg1: i32) -> (i32, i32) {
    %c0_i32 = arith.constant 0 : i32
    %c0_i32_0 = arith.constant 0 : i32
    return %c0_i32, %arg1 : i32, i32
  }
  func.func @transform_3(%arg0: i32, %arg1: i32) -> (i32, i32) {
    %c0_i32 = arith.constant 0 : i32
    return %arg0, %arg1 : i32, i32
  }
}

</mosaic_0001>

<llo_original>
// kernel: tpu_custom_call.1
$region0: #{tpu_custom_call.1}
  #allocation0 [shape = 'u32[]', space=smem, size = 0x4, offset = 0x4, fixed_abs, tag = 'smem constant byte address 0x4 - core index']
  #allocation1 [shape = 'u32[144,128]{1,0:T(1,128)}', space=vmem, size = 0x12000, scoped, tag = 'internal scratch']
  %s0 = inlined_call_operand.hbm [shape: f32[128,256], index: 0, kind: input, shape index: {}]
  %s1 = inlined_call_operand.hbm [shape: f32[256,256], index: 1, kind: input, shape index: {}]
  %s2 = inlined_call_operand.vmem [shape: f32[1,256], index: 2, kind: input, shape index: {}]
  %s3 = inlined_call_operand.hbm [shape: f32[128,256], index: 3, kind: output, shape index: {}]
  %s4 = sld [smem:[#allocation0]]
  $region30: #{tpu_custom_call.1} parent=0
    _
  %s6 = ssub.s32 1, %s4
  %s7 = scalar_select 0, %s6, %s4
  $region1: #{tpu_custom_call.1} parent=0
    #allocation2 [shape = 'u8[131072]{0}', space=vmem, size = 0x20000, scoped, tag = 'input window, operand 0, single buffered']
    #allocation3 [shape = 's32[1]{0}', space=sflag, size = 0x4, scoped, tag = 'scoped memory for tpu_custom_call.1']
    #allocation4 [shape = 's32[1]{0}', space=sflag, size = 0x4, scoped, tag = 'scoped memory for tpu_custom_call.1']
    #allocation5 [shape = 'u8[262144]{0}', space=vmem, size = 0x40000, scoped, tag = 'input window, operand 1, single buffered']
    #allocation6 [shape = 's32[1]{0}', space=sflag, size = 0x4, scoped, tag = 'scoped memory for tpu_custom_call.1']
    #allocation7 [shape = 'u8[131072]{0}', space=vmem, size = 0x20000, scoped, tag = 'output window, operand 0, single buffered']
    %8 = vsyncpa [#allocation3], 0
    %9 = vsyncpa [#allocation6], 0
    %10 = vsyncpa [#allocation4], 0
    // Predicated region
    $region2: #{tpu_custom_call.1} parent=1 // pred_check
      _
    $region3: #{tpu_custom_call.1} parent=1 // pred_check_branch
      %12 = sbr.rel (0) target = $region5
    $region4: #{tpu_custom_call.1} parent=1 // pred_region
      %s14 = ssub.s32 4096, 4096
      %15 = vsyncadd [#allocation3], %s14
      %s16 = sshll.u32 [#allocation2], 4
      %s17 = int_to_ptr.vmem [resolvable:$true] %s16
      %22 = dma.hbm_to_vmem [thread:$0]  %s0, 4096, %s17, [#allocation3], 256, 256, 16
    $region5: #{tpu_custom_call.1} parent=1 // pred_fallthru
      _
    // Predicated region
    $region6: #{tpu_custom_call.1} parent=1 // pred_check
      _
    $region7: #{tpu_custom_call.1} parent=1 // pred_check_branch
      %24 = sbr.rel (0) target = $region9
    $region8: #{tpu_custom_call.1} parent=1 // pred_region
      %s26 = ssub.s32 8192, 8192
      %27 = vsyncadd [#allocation6], %s26
      %s28 = sshll.u32 [#allocation5], 4
      %s29 = int_to_ptr.vmem [resolvable:$true] %s28
      %34 = dma.hbm_to_vmem [thread:$0]  %s1, 8192, %s29, [#allocation6], 256, 256, 16
    $region9: #{tpu_custom_call.1} parent=1 // pred_fallthru
      _
    // Predicated region
    $region10: #{tpu_custom_call.1} parent=1 // pred_check
      _
    $region11: #{tpu_custom_call.1} parent=1 // pred_check_branch
      %36 = sbr.rel (0) target = $region13
    $region12: #{tpu_custom_call.1} parent=1 // pred_region
      _
    $region13: #{tpu_custom_call.1} parent=1 // pred_fallthru
      _
    // Predicated region
    $region14: #{tpu_custom_call.1} parent=1 // pred_check
      _
    $region15: #{tpu_custom_call.1} parent=1 // pred_check_branch
      %38 = sbr.rel (0) target = $region17
    $region16: #{tpu_custom_call.1} parent=1 // pred_region
      %39 = dma.done [#allocation3], 4096
    $region17: #{tpu_custom_call.1} parent=1 // pred_fallthru
      _
    // Predicated region
    $region18: #{tpu_custom_call.1} parent=1 // pred_check
      _
    $region19: #{tpu_custom_call.1} parent=1 // pred_check_branch
      %41 = sbr.rel (0) target = $region21
    $region20: #{tpu_custom_call.1} parent=1 // pred_region
      %42 = dma.done [#allocation6], 8192
    $region21: #{tpu_custom_call.1} parent=1 // pred_fallthru
      _
    %v43 = vld [vmem:[#allocation2] sm:$0xff]
    %v44 = vld [vmem:[#allocation2 + $0x8] sm:$0xff]
    %v45 = vld [vmem:[#allocation2 + $0x10] sm:$0xff]
    %v46 = vld [vmem:[#allocation2 + $0x18] sm:$0xff]
    %v47 = vld [vmem:[#allocation2 + $0x20] sm:$0xff]
    %v48 = vld [vmem:[#allocation2 + $0x28] sm:$0xff]
    %v49 = vld [vmem:[#allocation2 + $0x30] sm:$0xff]
    %v50 = vld [vmem:[#allocation2 + $0x38] sm:$0xff]
    %v51 = vld [vmem:[#allocation2 + $0x40] sm:$0xff]
    %v52 = vld [vmem:[#allocation2 + $0x48] sm:$0xff]
    %v53 = vld [vmem:[#allocation2 + $0x50] sm:$0xff]
    %v54 = vld [vmem:[#allocation2 + $0x58] sm:$0xff]
    %v55 = vld [vmem:[#allocation2 + $0x60] sm:$0xff]
    %v56 = vld [vmem:[#allocation2 + $0x68] sm:$0xff]
    %v57 = vld [vmem:[#allocation2 + $0x70] sm:$0xff]
    %v58 = vld [vmem:[#allocation2 + $0x78] sm:$0xff]
    %v59 = vld [vmem:[#allocation2 + $0x80] sm:$0xff]
    %v60 = vld [vmem:[#allocation2 + $0x88] sm:$0xff]
    %v61 = vld [vmem:[#allocation2 + $0x90] sm:$0xff]
    %v62 = vld [vmem:[#allocation2 + $0x98] sm:$0xff]
    %v63 = vld [vmem:[#allocation2 + $0xa0] sm:$0xff]
    %v64 = vld [vmem:[#allocation2 + $0xa8] sm:$0xff]
    %v65 = vld [vmem:[#allocation2 + $0xb0] sm:$0xff]
    %v66 = vld [vmem:[#allocation2 + $0xb8] sm:$0xff]
    %v67 = vld [vmem:[#allocation2 + $0xc0] sm:$0xff]
    %v68 = vld [vmem:[#allocation2 + $0xc8] sm:$0xff]
    %v69 = vld [vmem:[#allocation2 + $0xd0] sm:$0xff]
    %v70 = vld [vmem:[#allocation2 + $0xd8] sm:$0xff]
    %v71 = vld [vmem:[#allocation2 + $0xe0] sm:$0xff]
    %v72 = vld [vmem:[#allocation2 + $0xe8] sm:$0xff]
    %v73 = vld [vmem:[#allocation2 + $0xf0] sm:$0xff]
    %v74 = vld [vmem:[#allocation2 + $0xf8] sm:$0xff]
    %v75 = vld [vmem:[#allocation5] sm:$0xff]
    %v76 = vld [vmem:[#allocation5 + $0x8] sm:$0xff]
    %v77 = vld [vmem:[#allocation5 + $0x10] sm:$0xff]
    %v78 = vld [vmem:[#allocation5 + $0x18] sm:$0xff]
    %v79 = vld [vmem:[#allocation5 + $0x20] sm:$0xff]
    %v80 = vld [vmem:[#allocation5 + $0x28] sm:$0xff]
    %v81 = vld [vmem:[#allocation5 + $0x30] sm:$0xff]
    %v82 = vld [vmem:[#allocation5 + $0x38] sm:$0xff]
    %v83 = vld [vmem:[#allocation5 + $0x40] sm:$0xff]
    %v84 = vld [vmem:[#allocation5 + $0x48] sm:$0xff]
    %v85 = vld [vmem:[#allocation5 + $0x50] sm:$0xff]
    %v86 = vld [vmem:[#allocation5 + $0x58] sm:$0xff]
    %v87 = vld [vmem:[#allocation5 + $0x60] sm:$0xff]
    %v88 = vld [vmem:[#allocation5 + $0x68] sm:$0xff]
    %v89 = vld [vmem:[#allocation5 + $0x70] sm:$0xff]
    %v90 = vld [vmem:[#allocation5 + $0x78] sm:$0xff]
    %v91 = vld [vmem:[#allocation5 + $0x80] sm:$0xff]
    %v92 = vld [vmem:[#allocation5 + $0x88] sm:$0xff]
    %v93 = vld [vmem:[#allocation5 + $0x90] sm:$0xff]
    %v94 = vld [vmem:[#allocation5 + $0x98] sm:$0xff]
    %v95 = vld [vmem:[#allocation5 + $0xa0] sm:$0xff]
    %v96 = vld [vmem:[#allocation5 + $0xa8] sm:$0xff]
    %v97 = vld [vmem:[#allocation5 + $0xb0] sm:$0xff]
    %v98 = vld [vmem:[#allocation5 + $0xb8] sm:$0xff]
    %v99 = vld [vmem:[#allocation5 + $0xc0] sm:$0xff]
    %v100 = vld [vmem:[#allocation5 + $0xc8] sm:$0xff]
    %v101 = vld [vmem:[#allocation5 + $0xd0] sm:$0xff]
    %v102 = vld [vmem:[#allocation5 + $0xd8] sm:$0xff]
    %v103 = vld [vmem:[#allocation5 + $0xe0] sm:$0xff]
    %v104 = vld [vmem:[#allocation5 + $0xe8] sm:$0xff]
    %v105 = vld [vmem:[#allocation5 + $0xf0] sm:$0xff]
    %v106 = vld [vmem:[#allocation5 + $0xf8] sm:$0xff]
    %v107 = vld [vmem:[#allocation5 + $0x100] sm:$0xff]
    %v108 = vld [vmem:[#allocation5 + $0x108] sm:$0xff]
    %v109 = vld [vmem:[#allocation5 + $0x110] sm:$0xff]
    %v110 = vld [vmem:[#allocation5 + $0x118] sm:$0xff]
    %v111 = vld [vmem:[#allocation5 + $0x120] sm:$0xff]
    %v112 = vld [vmem:[#allocation5 + $0x128] sm:$0xff]
    %v113 = vld [vmem:[#allocation5 + $0x130] sm:$0xff]
    %v114 = vld [vmem:[#allocation5 + $0x138] sm:$0xff]
    %v115 = vld [vmem:[#allocation5 + $0x140] sm:$0xff]
    %v116 = vld [vmem:[#allocation5 + $0x148] sm:$0xff]
    %v117 = vld [vmem:[#allocation5 + $0x150] sm:$0xff]
    %v118 = vld [vmem:[#allocation5 + $0x158] sm:$0xff]
    %v119 = vld [vmem:[#allocation5 + $0x160] sm:$0xff]
    %v120 = vld [vmem:[#allocation5 + $0x168] sm:$0xff]
    %v121 = vld [vmem:[#allocation5 + $0x170] sm:$0xff]
    %v122 = vld [vmem:[#allocation5 + $0x178] sm:$0xff]
    %v123 = vld [vmem:[#allocation5 + $0x180] sm:$0xff]
    %v124 = vld [vmem:[#allocation5 + $0x188] sm:$0xff]
    %v125 = vld [vmem:[#allocation5 + $0x190] sm:$0xff]
    %v126 = vld [vmem:[#allocation5 + $0x198] sm:$0xff]
    %v127 = vld [vmem:[#allocation5 + $0x1a0] sm:$0xff]
    %v128 = vld [vmem:[#allocation5 + $0x1a8] sm:$0xff]
    %v129 = vld [vmem:[#allocation5 + $0x1b0] sm:$0xff]
    %v130 = vld [vmem:[#allocation5 + $0x1b8] sm:$0xff]
    %v131 = vld [vmem:[#allocation5 + $0x1c0] sm:$0xff]
    %v132 = vld [vmem:[#allocation5 + $0x1c8] sm:$0xff]
    %v133 = vld [vmem:[#allocation5 + $0x1d0] sm:$0xff]
    %v134 = vld [vmem:[#allocation5 + $0x1d8] sm:$0xff]
    %v135 = vld [vmem:[#allocation5 + $0x1e0] sm:$0xff]
    %v136 = vld [vmem:[#allocation5 + $0x1e8] sm:$0xff]
    %v137 = vld [vmem:[#allocation5 + $0x1f0] sm:$0xff]
    %v138 = vld [vmem:[#allocation5 + $0x1f8] sm:$0xff]
    %v139 = vld [vmem:[%s2] sm:$0x3]
    %v141 = vlaneseq
    %v142 = vshrl.u32 %v141, 7
    %v143 = vsub.s32 0, %v142
    %v144 = vrot.slane %v139, %v143
    %v145 = vlaneseq
    %v146 = vshrl.u32 %v145, 7
    %v147 = vsub.s32 1, %v146
    %v148 = vrot.slane %v139, %v147
    %151 = vmatprep.subr.mxu0 %v76
    %152 = vmatpush1.msra.mxu0 %v75
    %153 = vmatprep.subr.mxu0 %v78
    %154 = vmatpush1.msra.mxu0 %v77
    %155 = vmatprep.subr.mxu0 %v80
    %156 = vmatpush1.msra.mxu0 %v79
    %157 = vmatprep.subr.mxu0 %v82
    %158 = vmatpush1.msra.mxu0 %v81
    %159 = vmatprep.subr.mxu0 %v84
    %160 = vmatpush1.msra.mxu0 %v83
    %161 = vmatprep.subr.mxu0 %v86
    %162 = vmatpush1.msra.mxu0 %v85
    %163 = vmatprep.subr.mxu0 %v88
    %164 = vmatpush1.msra.mxu0 %v87
    %165 = vmatprep.subr.mxu0 %v90
    %166 = vmatpush1.msra.mxu0 %v89
    %167 = vmatprep.subr.mxu0 %v92
    %168 = vmatpush1.msra.mxu0 %v91
    %169 = vmatprep.subr.mxu0 %v94
    %170 = vmatpush1.msra.mxu0 %v93
    %171 = vmatprep.subr.mxu0 %v96
    %172 = vmatpush1.msra.mxu0 %v95
    %173 = vmatprep.subr.mxu0 %v98
    %174 = vmatpush1.msra.mxu0 %v97
    %175 = vmatprep.subr.mxu0 %v100
    %176 = vmatpush1.msra.mxu0 %v99
    %177 = vmatprep.subr.mxu0 %v102
    %178 = vmatpush1.msra.mxu0 %v101
    %179 = vmatprep.subr.mxu0 %v104
    %180 = vmatpush1.msra.mxu0 %v103
    %181 = vmatprep.subr.mxu0 %v106
    %182 = vmatpush1.msra.mxu0 %v105
    %183 = vmatprep.subr.mxu0 %v108
    %184 = vmatpush1.msra.mxu0 %v107
    %185 = vmatprep.subr.mxu0 %v110
    %186 = vmatpush1.msra.mxu0 %v109
    %187 = vmatprep.subr.mxu0 %v112
    %188 = vmatpush1.msra.mxu0 %v111
    %189 = vmatprep.subr.mxu0 %v114
    %190 = vmatpush1.msra.mxu0 %v113
    %191 = vmatprep.subr.mxu0 %v116
    %192 = vmatpush1.msra.mxu0 %v115
    %193 = vmatprep.subr.mxu0 %v118
    %194 = vmatpush1.msra.mxu0 %v117
    %195 = vmatprep.subr.mxu0 %v120
    %196 = vmatpush1.msra.mxu0 %v119
    %197 = vmatprep.subr.mxu0 %v122
    %198 = vmatpush1.msra.mxu0 %v121
    %199 = vmatprep.subr.mxu0 %v124
    %200 = vmatpush1.msra.mxu0 %v123
    %201 = vmatprep.subr.mxu0 %v126
    %202 = vmatpush1.msra.mxu0 %v125
    %203 = vmatprep.subr.mxu0 %v128
    %204 = vmatpush1.msra.mxu0 %v127
    %205 = vmatprep.subr.mxu0 %v130
    %206 = vmatpush1.msra.mxu0 %v129
    %207 = vmatprep.subr.mxu0 %v132
    %208 = vmatpush1.msra.mxu0 %v131
    %209 = vmatprep.subr.mxu0 %v134
    %210 = vmatpush1.msra.mxu0 %v133
    %211 = vmatprep.subr.mxu0 %v136
    %212 = vmatpush1.msra.mxu0 %v135
    %213 = vmatprep.subr.mxu0 %v138
    %214 = vmatpush1.msra.mxu0 %v137
    %215 = vmatprep.mubr.f32.mxu0 %v44
    %216 = vmatmul.mubr.f32.gmra.mrb[0].mxu0 %v43
    %v217 = vpop.f32.mrb[0].mxu0
    %v218 = vadd.f32 %v144, %v217
    %v219 = vpop.f32.mrb[0].mxu0
    %v220 = vadd.f32 %v148, %v219
    %221 = vmatprep.mubr.f32.mxu0 %v46
    %222 = vmatmul.mubr.f32.gmra.mrb[0].mxu0 %v45
    %v223 = vpop.f32.mrb[0].mxu0
    %v224 = vadd.f32 %v144, %v223
    %v225 = vpop.f32.mrb[0].mxu0
    %v226 = vadd.f32 %v148, %v225
    %227 = vmatprep.mubr.f32.mxu0 %v48
    %228 = vmatmul.mubr.f32.gmra.mrb[0].mxu0 %v47
    %v229 = vpop.f32.mrb[0].mxu0
    %v230 = vadd.f32 %v144, %v229
    %v231 = vpop.f32.mrb[0].mxu0
    %v232 = vadd.f32 %v148, %v231
    %233 = vmatprep.mubr.f32.mxu0 %v50
    %234 = vmatmul.mubr.f32.gmra.mrb[0].mxu0 %v49
    %v235 = vpop.f32.mrb[0].mxu0
    %v236 = vadd.f32 %v144, %v235
    %v237 = vpop.f32.mrb[0].mxu0
    %v238 = vadd.f32 %v148, %v237
    %239 = vmatprep.mubr.f32.mxu0 %v52
    %240 = vmatmul.mubr.f32.gmra.mrb[0].mxu0 %v51
    %v241 = vpop.f32.mrb[0].mxu0
    %v242 = vadd.f32 %v144, %v241
    %v243 = vpop.f32.mrb[0].mxu0
    %v244 = vadd.f32 %v148, %v243
    %245 = vmatprep.mubr.f32.mxu0 %v54
    %246 = vmatmul.mubr.f32.gmra.mrb[0].mxu0 %v53
    %v247 = vpop.f32.mrb[0].mxu0
    %v248 = vadd.f32 %v144, %v247
    %v249 = vpop.f32.mrb[0].mxu0
    %v250 = vadd.f32 %v148, %v249
    %251 = vmatprep.mubr.f32.mxu0 %v56
    %252 = vmatmul.mubr.f32.gmra.mrb[0].mxu0 %v55
    %v253 = vpop.f32.mrb[0].mxu0
    %v254 = vadd.f32 %v144, %v253
    %v255 = vpop.f32.mrb[0].mxu0
    %v256 = vadd.f32 %v148, %v255
    %257 = vmatprep.mubr.f32.mxu0 %v58
    %258 = vmatmul.mubr.f32.gmra.mrb[0].mxu0 %v57
    %v259 = vpop.f32.mrb[0].mxu0
    %v260 = vadd.f32 %v144, %v259
    %v261 = vpop.f32.mrb[0].mxu0
    %v262 = vadd.f32 %v148, %v261
    %263 = vmatprep.mubr.f32.mxu0 %v60
    %264 = vmatmul.mubr.f32.gmra.mrb[0].mxu0 %v59
    %v265 = vpop.f32.mrb[0].mxu0
    %v266 = vadd.f32 %v144, %v265
    %v267 = vpop.f32.mrb[0].mxu0
    %v268 = vadd.f32 %v148, %v267
    %269 = vmatprep.mubr.f32.mxu0 %v62
    %270 = vmatmul.mubr.f32.gmra.mrb[0].mxu0 %v61
    %v271 = vpop.f32.mrb[0].mxu0
    %v272 = vadd.f32 %v144, %v271
    %v273 = vpop.f32.mrb[0].mxu0
    %v274 = vadd.f32 %v148, %v273
    %275 = vmatprep.mubr.f32.mxu0 %v64
    %276 = vmatmul.mubr.f32.gmra.mrb[0].mxu0 %v63
    %v277 = vpop.f32.mrb[0].mxu0
    %v278 = vadd.f32 %v144, %v277
    %v279 = vpop.f32.mrb[0].mxu0
    %v280 = vadd.f32 %v148, %v279
    %281 = vmatprep.mubr.f32.mxu0 %v66
    %282 = vmatmul.mubr.f32.gmra.mrb[0].mxu0 %v65
    %v283 = vpop.f32.mrb[0].mxu0
    %v284 = vadd.f32 %v144, %v283
    %v285 = vpop.f32.mrb[0].mxu0
    %v286 = vadd.f32 %v148, %v285
    %287 = vmatprep.mubr.f32.mxu0 %v68
    %288 = vmatmul.mubr.f32.gmra.mrb[0].mxu0 %v67
    %v289 = vpop.f32.mrb[0].mxu0
    %v290 = vadd.f32 %v144, %v289
    %v291 = vpop.f32.mrb[0].mxu0
    %v292 = vadd.f32 %v148, %v291
    %293 = vmatprep.mubr.f32.mxu0 %v70
    %294 = vmatmul.mubr.f32.gmra.mrb[0].mxu0 %v69
    %v295 = vpop.f32.mrb[0].mxu0
    %v296 = vadd.f32 %v144, %v295
    %v297 = vpop.f32.mrb[0].mxu0
    %v298 = vadd.f32 %v148, %v297
    %299 = vmatprep.mubr.f32.mxu0 %v72
    %300 = vmatmul.mubr.f32.gmra.mrb[0].mxu0 %v71
    %v301 = vpop.f32.mrb[0].mxu0
    %v302 = vadd.f32 %v144, %v301
    %v303 = vpop.f32.mrb[0].mxu0
    %v304 = vadd.f32 %v148, %v303
    %305 = vmatprep.mubr.f32.mxu0 %v74
    %306 = vmatmul.mubr.f32.gmra.mrb[0].mxu0 %v73
    %v307 = vpop.f32.mrb[0].mxu0
    %v308 = vadd.f32 %v144, %v307
    %v309 = vpop.f32.mrb[0].mxu0
    %v310 = vadd.f32 %v148, %v309
    %311 = vdwg.mxu0
    %312 = vst [vmem:[#allocation7] sm:$0xff] %v218
    %313 = vst [vmem:[#allocation7 + $0x8] sm:$0xff] %v220
    %314 = vst [vmem:[#allocation7 + $0x10] sm:$0xff] %v224
    %315 = vst [vmem:[#allocation7 + $0x18] sm:$0xff] %v226
    %316 = vst [vmem:[#allocation7 + $0x20] sm:$0xff] %v230
    %317 = vst [vmem:[#allocation7 + $0x28] sm:$0xff] %v232
    %318 = vst [vmem:[#allocation7 + $0x30] sm:$0xff] %v236
    %319 = vst [vmem:[#allocation7 + $0x38] sm:$0xff] %v238
    %320 = vst [vmem:[#allocation7 + $0x40] sm:$0xff] %v242
    %321 = vst [vmem:[#allocation7 + $0x48] sm:$0xff] %v244
    %322 = vst [vmem:[#allocation7 + $0x50] sm:$0xff] %v248
    %323 = vst [vmem:[#allocation7 + $0x58] sm:$0xff] %v250
    %324 = vst [vmem:[#allocation7 + $0x60] sm:$0xff] %v254
    %325 = vst [vmem:[#allocation7 + $0x68] sm:$0xff] %v256
    %326 = vst [vmem:[#allocation7 + $0x70] sm:$0xff] %v260
    %327 = vst [vmem:[#allocation7 + $0x78] sm:$0xff] %v262
    %328 = vst [vmem:[#allocation7 + $0x80] sm:$0xff] %v266
    %329 = vst [vmem:[#allocation7 + $0x88] sm:$0xff] %v268
    %330 = vst [vmem:[#allocation7 + $0x90] sm:$0xff] %v272
    %331 = vst [vmem:[#allocation7 + $0x98] sm:$0xff] %v274
    %332 = vst [vmem:[#allocation7 + $0xa0] sm:$0xff] %v278
    %333 = vst [vmem:[#allocation7 + $0xa8] sm:$0xff] %v280
    %334 = vst [vmem:[#allocation7 + $0xb0] sm:$0xff] %v284
    %335 = vst [vmem:[#allocation7 + $0xb8] sm:$0xff] %v286
    %336 = vst [vmem:[#allocation7 + $0xc0] sm:$0xff] %v290
    %337 = vst [vmem:[#allocation7 + $0xc8] sm:$0xff] %v292
    %338 = vst [vmem:[#allocation7 + $0xd0] sm:$0xff] %v296
    %339 = vst [vmem:[#allocation7 + $0xd8] sm:$0xff] %v298
    %340 = vst [vmem:[#allocation7 + $0xe0] sm:$0xff] %v302
    %341 = vst [vmem:[#allocation7 + $0xe8] sm:$0xff] %v304
    %342 = vst [vmem:[#allocation7 + $0xf0] sm:$0xff] %v308
    %343 = vst [vmem:[#allocation7 + $0xf8] sm:$0xff] %v310
    // Predicated region
    $region22: #{tpu_custom_call.1} parent=1 // pred_check
      _
    $region23: #{tpu_custom_call.1} parent=1 // pred_check_branch
      %345 = sbr.rel (0) target = $region25
    $region24: #{tpu_custom_call.1} parent=1 // pred_region
      %s347 = ssub.s32 4096, 4096
      %348 = vsyncadd [#allocation4], %s347
      %s349 = sshll.u32 [#allocation7], 4
      %s350 = int_to_ptr.vmem [resolvable:$true] %s349
      %355 = dma.vmem_to_hbm [thread:$0]  %s350, 4096, %s3, [#allocation4], 256, 256, 16
    $region25: #{tpu_custom_call.1} parent=1 // pred_fallthru
      _
    // Predicated region
    $region26: #{tpu_custom_call.1} parent=1 // pred_check
      _
    $region27: #{tpu_custom_call.1} parent=1 // pred_check_branch
      %357 = sbr.rel (0) target = $region29
    $region28: #{tpu_custom_call.1} parent=1 // pred_region
      %358 = dma.done [#allocation4], 4096
    $region29: #{tpu_custom_call.1} parent=1 // pred_fallthru
      _
    %359 = vsyncpa [#allocation3], 1
    %360 = vsyncpa [#allocation6], 1
    %361 = vsyncpa [#allocation4], 1

</llo_original>
